<compile_context>
chip_gen: v6e
topology: v6e:2x2x1
jax: 0.10.0
libtpu: 0.0.40
codegen_flags: <defaults>
</compile_context>

<pallas_src>
import functools

import jax
import jax.numpy as jnp
from jax.experimental import pallas as pl
from jax.experimental.pallas import tpu as pltpu


def _round_up(x, m):
    return ((x + m - 1) // m) * m


def _ff_kernel(x_ref, w_ref, b_ref, o_ref, acc_ref, *, feat_dim, tile_k, needs_k_mask):
    # x_ref: (TILE_B, TILE_K) VMEM | w_ref: (1, TILE_K) VMEM | b_ref: (1,) SMEM
    # o_ref: (TILE_B, 1) VMEM      | acc_ref: (TILE_B, 1) f32 VMEM scratch
    k = pl.program_id(1)

    @pl.when(k == 0)
    def _init():
        acc_ref[...] = jnp.zeros_like(acc_ref)

    xv = x_ref[...].astype(jnp.float32)   # upcast right after load (bf16-input safe on v5e)
    wv = w_ref[...].astype(jnp.float32)
    prod = xv * wv                        # VPU broadcast multiply

    if needs_k_mask:
        # Final partial K block: zero the garbage lanes beyond feat_dim so they
        # cannot corrupt valid rows of the accumulator.
        lane = jax.lax.broadcasted_iota(jnp.int32, prod.shape, dimension=1)
        valid = feat_dim - k * tile_k
        prod = jnp.where(lane < valid, prod, 0.0)

    acc_ref[...] += jnp.sum(prod, axis=1, keepdims=True)   # XLU cross-lane reduce -> (TILE_B, 1)

    @pl.when(k == pl.num_programs(1) - 1)
    def _finalize():
        y = jax.nn.sigmoid(acc_ref[...] + b_ref[0])         # EUP sigmoid, scalar bias from SMEM
        o_ref[...] = y.astype(o_ref.dtype)                   # direct (TILE_B, 1) store


def single_feedforward(x, w, b, *, tile_b=None, tile_k=None, core_parallel=False,
                       vmem_limit_bytes=None, x_tile_bytes=8 * 1024 * 1024):
    """Pallas equivalent of SingleFeedforward.forward: sigmoid(x @ w.T + b).

    x: (B, D) float32 or bfloat16
    w: (1, D) float32 (PyTorch nn.Linear weight layout: (out_features, in_features))
    b: (1,)   float32
    returns: (B, 1) in x.dtype
    """
    B, D = x.shape
    itemsize = jnp.dtype(x.dtype).itemsize
    d_lanes = _round_up(D, 128)                       # true VMEM lane footprint of a row

    # ---- feature (K) tiling: keep the x tile under x_tile_bytes for any D ----
    if tile_k is None:
        rows_full_k = x_tile_bytes // (d_lanes * itemsize)
        if rows_full_k >= min(256, B):
            tile_k = D                                # whole feature dim resident (common case)
        else:
            # Large D: chunk the feature dim so ~256 batch rows still fit the budget.
            tile_k = max(128, ((x_tile_bytes // (256 * itemsize)) // 128) * 128)
    if tile_k >= D:
        tile_k = D
        num_k = 1
    else:
        tile_k = max(128, (tile_k // 128) * 128)      # lane-aligned K chunks
        num_k = pl.cdiv(D, tile_k)
    needs_k_mask = (num_k > 1) and (D % tile_k != 0)
    tile_k_lanes = _round_up(tile_k, 128)

    # ---- batch tiling: ~x_tile_bytes per block, capped so the lane-padded
    #      (tile_b, 1) output / accumulator buffers stay small ----
    if tile_b is None:
        cap = max(8, x_tile_bytes // (tile_k_lanes * itemsize))
        cap = min(cap, 4096)
        tile_b = B if cap >= B else max(8, (cap // 8) * 8)
    else:
        tile_b = B if tile_b >= B else max(8, (tile_b // 8) * 8)
    num_b = pl.cdiv(B, tile_b)

    w_row = w.reshape(1, D).astype(jnp.float32)       # lane-dense resident weight row
    bias = b.reshape(1).astype(jnp.float32)           # scalar -> SMEM

    kernel = functools.partial(_ff_kernel, feat_dim=D, tile_k=tile_k,
                               needs_k_mask=needs_k_mask)
    batch_sem = pltpu.CORE_PARALLEL if core_parallel else pltpu.PARALLEL

    # NOTE: for production shapes with D << 128, packing 128//D logical rows per
    # lane row (wrapper reshape + segmented lane reduce) would recover the wasted
    # (128 - D)/128 of every vreg/VMEM row; omitted here for generality.
    return pl.pallas_call(
        kernel,
        out_shape=jax.ShapeDtypeStruct((B, 1), x.dtype),
        grid_spec=pltpu.PrefetchScalarGridSpec(
            num_scalar_prefetch=0,
            grid=(num_b, num_k),                                        # reduction axis last
            in_specs=[
                pl.BlockSpec((tile_b, tile_k), lambda i, k: (i, k)),    # x tile (pipelined)
                pl.BlockSpec((1, tile_k), lambda i, k: (0, k)),         # weight row
                pl.BlockSpec(memory_space=pltpu.MemorySpace.SMEM),      # bias scalar
            ],
            out_specs=pl.BlockSpec((tile_b, 1), lambda i, k: (i, 0)),   # direct (B, 1) output
            scratch_shapes=[pltpu.VMEM((tile_b, 1), jnp.float32)],      # K accumulator
        ),
        compiler_params=pltpu.CompilerParams(
            dimension_semantics=(batch_sem, pltpu.ARBITRARY),
            vmem_limit_bytes=vmem_limit_bytes,
        ),
    )(x, w_row, bias)


if __name__ == "__main__":
    key = jax.random.PRNGKey(0)
    keys = jax.random.split(key, 9)

    def ref_fn(x, w, b):
        return jax.nn.sigmoid(x @ w.T + b)

    # 1) Small shape consistent with the module: batch=8, input_size=32.
    B1, D1 = 8, 32
    bound = 1.0 / (D1 ** 0.5)
    w1 = jax.random.uniform(keys[0], (1, D1), jnp.float32, -bound, bound)
    b1 = jax.random.uniform(keys[1], (1,), jnp.float32, -bound, bound)
    x1 = jax.random.normal(keys[2], (B1, D1), jnp.float32)
    out1 = jax.block_until_ready(single_feedforward(x1, w1, b1))
    assert out1.shape == (B1, 1)
    assert jnp.allclose(out1, ref_fn(x1, w1, b1), atol=1e-5, rtol=1e-5)

    # 2) Multi-batch-tile path with a partial (masked) boundary block, no padding.
    B2, D2 = 300, 160
    bound = 1.0 / (D2 ** 0.5)
    w2 = jax.random.uniform(keys[3], (1, D2), jnp.float32, -bound, bound)
    b2 = jax.random.uniform(keys[4], (1,), jnp.float32, -bound, bound)
    x2 = jax.random.normal(keys[5], (B2, D2), jnp.float32)
    out2 = jax.block_until_ready(single_feedforward(x2, w2, b2, tile_b=128))
    assert out2.shape == (B2, 1)
    assert jnp.allclose(out2, ref_fn(x2, w2, b2), atol=1e-5, rtol=1e-5)

    # 3) K-tiled (large-D) path with accumulator + masked partial final K block.
    B3, D3 = 64, 300
    bound = 1.0 / (D3 ** 0.5)
    w3 = jax.random.uniform(keys[6], (1, D3), jnp.float32, -bound, bound)
    b3 = jax.random.uniform(keys[7], (1,), jnp.float32, -bound, bound)
    x3 = jax.random.normal(keys[8], (B3, D3), jnp.float32)
    out3 = jax.block_until_ready(single_feedforward(x3, w3, b3, tile_b=64, tile_k=128))
    assert out3.shape == (B3, 1)
    assert jnp.allclose(out3, ref_fn(x3, w3, b3), atol=1e-5, rtol=1e-5)

    print("KERNEL_OK")
</pallas_src>

<mosaic_0001>
module attributes {stable_mosaic.version = 11 : i64} {
  func.func @_ff_kernel(%arg0: i32, %arg1: i32, %arg2: memref<8x32xf32, #tpu.memory_space<vmem>>, %arg3: memref<1x32xf32, #tpu.memory_space<vmem>>, %arg4: memref<1xf32, #tpu.memory_space<smem>>, %arg5: memref<8x1xf32, #tpu.memory_space<vmem>>, %arg6: memref<8x1xf32, #tpu.memory_space<vmem>>) attributes {dimension_semantics = [#tpu.dimension_semantics<parallel>, #tpu.dimension_semantics<arbitrary>], iteration_bounds = array<i64: 1, 1>, scalar_prefetch = 0 : i64, scratch_operands = 1 : i64, tpu.core_type = #tpu.core_type<tc>, window_params = [{transform_indices = @transform_0, window_bounds = array<i64: 8, 32>}, {transform_indices = @transform_1, window_bounds = array<i64: 1, 32>}, {transform_indices = @transform_2, window_bounds = array<i64: 1>}, {transform_indices = @transform_3, window_bounds = array<i64: 8, 1>}]} {
    %c0_i32 = arith.constant 0 : i32
    %0 = arith.cmpi eq, %arg1, %c0_i32 : i32
    %1 = arith.extui %0 : i1 to i32
    %c0_i32_0 = arith.constant 0 : i32
    %2 = arith.cmpi ne, %1, %c0_i32_0 : i32
    scf.if %2 {
      %cst_10 = arith.constant 0.000000e+00 : f32
      %15 = vector.broadcast %cst_10 : f32 to vector<8x1xf32>
      %c0_11 = arith.constant 0 : index
      %c0_12 = arith.constant 0 : index
      %16 = vector.load %arg6[%c0_11, %c0_12] : memref<8x1xf32, #tpu.memory_space<vmem>>, vector<8x1xf32>
      tpu.vector_store %arg6[%c0_11, %c0_12], %15 {strides = array<i32>} : memref<8x1xf32, #tpu.memory_space<vmem>>, vector<8x1xf32>,
    } else {
    }
    %c0 = arith.constant 0 : index
    %c0_1 = arith.constant 0 : index
    %3 = vector.load %arg2[%c0, %c0_1] : memref<8x32xf32, #tpu.memory_space<vmem>>, vector<8x32xf32>
    %c0_2 = arith.constant 0 : index
    %c0_3 = arith.constant 0 : index
    %4 = vector.load %arg3[%c0_2, %c0_3] : memref<1x32xf32, #tpu.memory_space<vmem>>, vector<1x32xf32>
    %5 = vector.broadcast %4 : vector<1x32xf32> to vector<8x32xf32>
    %6 = arith.mulf %3, %5 : vector<8x32xf32>
    %c0_4 = arith.constant 0 : index
    %c0_5 = arith.constant 0 : index
    %7 = vector.load %arg6[%c0_4, %c0_5] : memref<8x1xf32, #tpu.memory_space<vmem>>, vector<8x1xf32>
    %cst = arith.constant dense<0.000000e+00> : vector<8xf32>
    %8 = vector.multi_reduction <add>, %6, %cst [1] : vector<8x32xf32> to vector<8xf32>
    %9 = vector.shape_cast %8 : vector<8xf32> to vector<8x1xf32>
    %10 = arith.addf %7, %9 : vector<8x1xf32>
    %c0_6 = arith.constant 0 : index
    %c0_7 = arith.constant 0 : index
    %11 = vector.load %arg6[%c0_6, %c0_7] : memref<8x1xf32, #tpu.memory_space<vmem>>, vector<8x1xf32>
    tpu.vector_store %arg6[%c0_6, %c0_7], %10 {strides = array<i32>} : memref<8x1xf32, #tpu.memory_space<vmem>>, vector<8x1xf32>,
    %c0_i32_8 = arith.constant 0 : i32
    %12 = arith.cmpi eq, %arg1, %c0_i32_8 : i32
    %13 = arith.extui %12 : i1 to i32
    %c0_i32_9 = arith.constant 0 : i32
    %14 = arith.cmpi ne, %13, %c0_i32_9 : i32
    scf.if %14 {
      %c0_10 = arith.constant 0 : index
      %c0_11 = arith.constant 0 : index
      %15 = vector.load %arg6[%c0_10, %c0_11] : memref<8x1xf32, #tpu.memory_space<vmem>>, vector<8x1xf32>
      %c0_12 = arith.constant 0 : index
      %16 = memref.load %arg4[%c0_12] : memref<1xf32, #tpu.memory_space<smem>>
      %17 = vector.broadcast %16 : f32 to vector<8x1xf32>
      %18 = arith.addf %15, %17 : vector<8x1xf32>
      %19 = arith.negf %18 : vector<8x1xf32>
      %20 = math.exp %19 : vector<8x1xf32>
      %cst_13 = arith.constant 1.000000e+00 : f32
      %21 = vector.broadcast %cst_13 : f32 to vector<8x1xf32>
      %22 = arith.addf %21, %20 : vector<8x1xf32>
      %23 = arith.divf %21, %22 : vector<8x1xf32>
      %c0_14 = arith.constant 0 : index
      %c0_15 = arith.constant 0 : index
      %24 = vector.load %arg5[%c0_14, %c0_15] : memref<8x1xf32, #tpu.memory_space<vmem>>, vector<8x1xf32>
      tpu.vector_store %arg5[%c0_14, %c0_15], %23 {strides = array<i32>} : memref<8x1xf32, #tpu.memory_space<vmem>>, vector<8x1xf32>,
    } else {
    }
    return
  }
  func.func @transform_0(%arg0: i32, %arg1: i32) -> (i32, i32) {
    %c0_i32 = arith.constant 0 : i32
    return %arg0, %arg1 : i32, i32
  }
  func.func @transform_1(%arg0: i32, %arg1: i32) -> (i32, i32) {
    %c0_i32 = arith.constant 0 : i32
    %c0_i32_0 = arith.constant 0 : i32
    return %c0_i32, %arg1 : i32, i32
  }
  func.func @transform_2(%arg0: i32, %arg1: i32) -> i32 {
    %c0_i32 = arith.constant 0 : i32
    %c0_i32_0 = arith.constant 0 : i32
    return %c0_i32 : i32
  }
  func.func @transform_3(%arg0: i32, %arg1: i32) -> (i32, i32) {
    %c0_i32 = arith.constant 0 : i32
    %c0_i32_0 = arith.constant 0 : i32
    return %arg0, %c0_i32 : i32, i32
  }
}

</mosaic_0001>

<llo_original>
// kernel: tpu_custom_call.1
$region0: #{tpu_custom_call.1}
  #allocation0 [shape = 'u32[]', space=smem, size = 0x4, offset = 0x4, fixed_abs, tag = 'smem constant byte address 0x4 - core index']
  #allocation1 [shape = 'u32[144,128]{1,0:T(1,128)}', space=vmem, size = 0x12000, scoped, tag = 'internal scratch']
  #allocation2 [shape = 'f32[8,1]{1,0:T(8,128)}', space=vmem, size = 0x1000, scoped, tag = 'scratch operand']
  #allocation3 [shape = 'f32[1]{0:T(128)S(6)}', space=smem, size = 0x200, scoped, tag = 'scoped memory for tpu_custom_call.1']
  %s0 = inlined_call_operand.hbm [shape: f32[8,32], index: 0, kind: input, shape index: {}]
  %s1 = inlined_call_operand.vmem [shape: f32[1,32], index: 1, kind: input, shape index: {}]
  %s2 = inlined_call_operand.<no memory space> [shape: f32[1], index: 2, kind: input, shape index: {}]
  %s3 = inlined_call_operand.vmem [shape: f32[8,1], index: 3, kind: output, shape index: {}]
  %s4 = sld [smem:[#allocation0]]
  $region34: #{tpu_custom_call.1} parent=0
    _
  %s6 = ssub.s32 1, %s4
  %s7 = scalar_select 0, %s6, %s4
  %8 = sst [smem:[#allocation3]] %s2
  $region1: #{tpu_custom_call.1} parent=0
    #allocation4 [shape = 'u8[4096]{0}', space=vmem, size = 0x1000, scoped, tag = 'input window, operand 0, single buffered']
    #allocation5 [shape = 's32[1]{0}', space=sflag, size = 0x4, scoped, tag = 'scoped memory for tpu_custom_call.1']
    %9 = vsyncpa [#allocation5], 0
    // Predicated region
    $region2: #{tpu_custom_call.1} parent=1 // pred_check
      _
    $region3: #{tpu_custom_call.1} parent=1 // pred_check_branch
      %11 = sbr.rel (0) target = $region5
    $region4: #{tpu_custom_call.1} parent=1 // pred_region
      %s13 = ssub.s32 128, 128
      %14 = vsyncadd [#allocation5], %s13
      %s16 = sshll.u32 [#allocation4], 4
      %s17 = int_to_ptr.vmem [resolvable:$true] %s16
      %19 = dma.hbm_to_vmem [thread:$0]  %s0, 128, %s17, [#allocation5]
    $region5: #{tpu_custom_call.1} parent=1 // pred_fallthru
      _
    // Predicated region
    $region6: #{tpu_custom_call.1} parent=1 // pred_check
      _
    $region7: #{tpu_custom_call.1} parent=1 // pred_check_branch
      %21 = sbr.rel (0) target = $region9
    $region8: #{tpu_custom_call.1} parent=1 // pred_region
      _
    $region9: #{tpu_custom_call.1} parent=1 // pred_fallthru
      _
    // Predicated region
    $region10: #{tpu_custom_call.1} parent=1 // pred_check
      _
    $region11: #{tpu_custom_call.1} parent=1 // pred_check_branch
      %23 = sbr.rel (0) target = $region13
    $region12: #{tpu_custom_call.1} parent=1 // pred_region
      _
    $region13: #{tpu_custom_call.1} parent=1 // pred_fallthru
      _
    // Predicated region
    $region14: #{tpu_custom_call.1} parent=1 // pred_check
      _
    $region15: #{tpu_custom_call.1} parent=1 // pred_check_branch
      %25 = sbr.rel (0) target = $region17
    $region16: #{tpu_custom_call.1} parent=1 // pred_region
      %26 = dma.done [#allocation5], 128
    $region17: #{tpu_custom_call.1} parent=1 // pred_fallthru
      _
    %p27 = scmp.eq.s32.totalorder 0, 0
    // Predicated region
    $region18: #{tpu_custom_call.1} parent=1 // pred_check
      %p28 = pneg %p27
    $region19: #{tpu_custom_call.1} parent=1 // pred_check_branch
      %30 = sbr.rel (%p28) target = $region21
    $region20: #{tpu_custom_call.1} parent=1 // pred_region
      %vm31 = vcmask 7168
      %32 = vst.msk [vmem:[#allocation2] sm:$0xff] %vm31, 0.0
    $region21: #{tpu_custom_call.1} parent=1 // pred_fallthru
      _
    %v33 = vld [vmem:[#allocation4] sm:$0xff]
    %v34 = vld [vmem:[%s1] sm:$0x1]
    %v36 = vlaneseq
    %v37 = vshrl.u32 %v36, 7
    %v38 = vsub.s32 0, %v37
    %v39 = vrot.slane %v34, %v38
    %v41 = vmul.f32 %v33, %v39
    %v42 = vld [vmem:[#allocation2] sm:$0xff]
    %vm43 = vcmask 261120
    %v44 = vsel %vm43, %v41, 0.0
    %45 = vadd.xlane.f32.xlu0 %v44
    %v46 = vpop.xlane.xlu0 %45
    %v47 = vadd.f32 %v42, %v46
    %vm48 = vcmask 7168
    %49 = vst.msk [vmem:[#allocation2] sm:$0xff] %vm48, %v47
    // Predicated region
    $region22: #{tpu_custom_call.1} parent=1 // pred_check
      %p50 = pneg %p27
    $region23: #{tpu_custom_call.1} parent=1 // pred_check_branch
      %52 = sbr.rel (%p50) target = $region25
    $region24: #{tpu_custom_call.1} parent=1 // pred_region
      %v53 = vld [vmem:[#allocation2] sm:$0xff]
      %s54 = sld [smem:[#allocation3]]
      %v55 = vstv %s54
      %v56 = vadd.f32 %v53, %v55
      %v57 = vxor.u32 %v56, 2147483648
      %v58 = vmul.f32 %v57, 1.442695
      %v59 = vpow.pop %v58
      %v60 = vadd.f32 %v59, 1.0
      %v61 = vrcp.pop %v60
      %v62 = vmul.f32 1.0, %v61
      %63 = vst.msk [vmem:[%s3] sm:$0xff] %vm48, %v62
    $region25: #{tpu_custom_call.1} parent=1 // pred_fallthru
      _
    // Predicated region
    $region26: #{tpu_custom_call.1} parent=1 // pred_check
      _
    $region27: #{tpu_custom_call.1} parent=1 // pred_check_branch
      %65 = sbr.rel (0) target = $region29
    $region28: #{tpu_custom_call.1} parent=1 // pred_region
      _
    $region29: #{tpu_custom_call.1} parent=1 // pred_fallthru
      _
    // Predicated region
    $region30: #{tpu_custom_call.1} parent=1 // pred_check
      _
    $region31: #{tpu_custom_call.1} parent=1 // pred_check_branch
      %67 = sbr.rel (0) target = $region33
    $region32: #{tpu_custom_call.1} parent=1 // pred_region
      _
    $region33: #{tpu_custom_call.1} parent=1 // pred_fallthru
      _
    %68 = vsyncpa [#allocation5], 1

</llo_original>
